<compile_context>
chip_gen: v7x
topology: tpu7x:2x2x1
jax: 0.10.0
libtpu: 0.0.40
codegen_flags: <defaults>
</compile_context>

<pallas_src>
import jax
import jax.numpy as jnp
from jax.experimental import pallas as pl
from jax.experimental.pallas import tpu as pltpu


def ranknet_kernel(ut_ref, it_t_ref, w1u_t_ref, w1i_t_ref, b1_ref, w2_ref,
                   b2_ref, out_ref):
    # ut_ref:    (D, B)    user embeddings for this batch, pre-transposed
    # it_t_ref:  (D, TM)   one lane-dense tile of the transposed item table
    # w1u_t_ref: (D, D)    W1[:D].T  (user half of the first Linear)
    # w1i_t_ref: (D, D)    W1[D:].T  (item half of the first Linear)
    # b1_ref:    (D, 1)    first-Linear bias as a column (D on sublanes)
    # w2_ref:    (D, 1)    second-Linear weight as a column
    # b2_ref:    (1,) SMEM second-Linear bias (scalar)
    # out_ref:   (B, TM)   ratings tile (item dim lane-dense)
    D, B = ut_ref.shape
    TM = it_t_ref.shape[1]

    # First Linear, split over the concat axis.  Pre-transposed operands mean
    # the MXU results are already in (D, TM)/(D, B) layout: no XLU transposes.
    i_proj_t = jnp.dot(w1i_t_ref[...], it_t_ref[...],
                       preferred_element_type=jnp.float32)            # (D, TM)
    u_proj_t = jnp.dot(w1u_t_ref[...], ut_ref[...],
                       preferred_element_type=jnp.float32)            # (D, B)

    # Fold b1 into the small user-projection tile (cheaper than the wide tile).
    u_bias_t = u_proj_t + b1_ref[...]                                  # (D, B)

    # Hoisted out of the per-user unroll: JAX does not CSE broadcast_in_dim.
    w2_b = jnp.broadcast_to(w2_ref[...], (D, TM))                      # (D, TM)
    b2 = b2_ref[0]                                                     # scalar (SMEM)

    # Static per-user unroll (B is small and compile-time constant).  Each
    # iteration's intermediates die at the row append, so nothing spills.
    rows = []
    for b in range(B):
        u_col = u_bias_t[:, b:b + 1]                                   # (D, 1) static lane slice
        # nn.Dropout(0.2) is the identity at inference time.
        # TODO(synk): train-mode dropout (random mask + 1/(1-p) scaling) not implemented.
        hidden = jnp.maximum(i_proj_t + u_col, 0.0)                    # (D, TM) ReLU, lanes fully used
        # Second Linear: VPU multiply + sublane reduce over D (MXU variant not
        # worth it while the kernel is overhead-bound).
        rows.append(jnp.sum(hidden * w2_b, axis=0, keepdims=True))     # (1, TM)

    # Single unmasked block store + one bias add for the whole tile (replaces
    # 8 sublane-masked vst.msk row writes and 8 scalar-bias adds).
    out_ref[...] = jnp.concatenate(rows, axis=0) + b2                  # (B, TM)


def prepare_ranknet_params(user_emb, item_emb, w1, b1, w2, b2):
    """One-time parameter layout prep (NOT per call): transposes + reshapes.

    w1 is the (2D, D) matrix such that ratings use `cat @ w1` (i.e. the
    PyTorch Linear weight already transposed)."""
    D = user_emb.shape[1]
    return dict(
        user_emb_t=jnp.asarray(user_emb).T,    # (D, n_user) -> per-call column gather
        item_emb_t=jnp.asarray(item_emb).T,    # (D, M) lane-dense item layout
        w1u_t=jnp.asarray(w1[:D]).T,           # (D, D)
        w1i_t=jnp.asarray(w1[D:]).T,           # (D, D)
        b1_col=jnp.asarray(b1).reshape(D, 1),  # column layout: D on sublanes
        w2_col=jnp.asarray(w2).reshape(D, 1),  # column layout: D on sublanes
        b2_s=jnp.asarray(b2).reshape(1),       # scalar for SMEM
    )


def ranknet_forward(instances, params, *, tile_m=None):
    """Pallas implementation of RankNet.forward(instances) -> (B, M) ratings.

    tile_m=None  -> tile_m = M (grid=(1,)): best on single-TC v5e/v6e.
    tile_m=M//2  -> even "parallel" grid for dual-TC v7x (benchmark it; at
                    small M the duplicated fixed costs may dominate).
    """
    item_emb_t = params["item_emb_t"]
    D, M = item_emb_t.shape
    B = instances.shape[0]
    if tile_m is None:
        tile_m = M
    assert M % tile_m == 0
    assert tile_m == M or tile_m % 128 == 0, "item tile must be lane-aligned"

    # Glue in plain JAX: embedding gather straight into the (D, B) layout.
    # TODO(synk): at large B, fuse this gather into the kernel via scalar
    # prefetch + a pl.Element row-gather BlockSpec; negligible at B=8.
    users_t = params["user_emb_t"][:, instances]                       # (D, B)

    out = pl.pallas_call(
        ranknet_kernel,
        out_shape=jax.ShapeDtypeStruct((B, M), jnp.float32),
        grid_spec=pltpu.PrefetchScalarGridSpec(
            num_scalar_prefetch=0,
            grid=(M // tile_m,),
            in_specs=[
                pl.BlockSpec((D, B), lambda i: (0, 0)),                # users^T (resident)
                pl.BlockSpec((D, tile_m), lambda i: (0, i)),           # item^T tile (lane-dense)
                pl.BlockSpec((D, D), lambda i: (0, 0)),                # W1u^T
                pl.BlockSpec((D, D), lambda i: (0, 0)),                # W1i^T
                pl.BlockSpec((D, 1), lambda i: (0, 0)),                # b1 column
                pl.BlockSpec((D, 1), lambda i: (0, 0)),                # w2 column
                pl.BlockSpec(memory_space=pltpu.MemorySpace.SMEM),     # b2 scalar
            ],
            out_specs=pl.BlockSpec((B, tile_m), lambda i: (0, i)),
        ),
        compiler_params=pltpu.CompilerParams(
            dimension_semantics=("parallel",)),
    )(users_t, item_emb_t, params["w1u_t"], params["w1i_t"],
      params["b1_col"], params["w2_col"], params["b2_s"])
    return out


if __name__ == "__main__":
    key = jax.random.PRNGKey(0)
    n_user, m_item, dim, batch = 100, 256, 32, 8

    k1, k2, k3, k4, k5, k6, k7 = jax.random.split(key, 7)

    def xavier_normal(k, shape):
        std = jnp.sqrt(2.0 / (shape[0] + shape[1]))
        return jax.random.normal(k, shape, jnp.float32) * std

    # Deterministic synthetic parameters (shapes follow RankNet.__init__).
    user_emb = xavier_normal(k1, (n_user, dim))          # nn.Embedding(n_user, dim)
    item_emb = xavier_normal(k2, (m_item, dim))          # nn.Embedding(m_item, dim)
    w1 = jax.random.normal(k3, (2 * dim, dim), jnp.float32) * 0.1   # Linear(2D, D) weight^T
    b1 = jax.random.normal(k4, (dim,), jnp.float32) * 0.1
    w2 = jax.random.normal(k5, (dim, 1), jnp.float32) * 0.1         # Linear(D, 1) weight^T
    b2 = jax.random.normal(k6, (1,), jnp.float32) * 0.1

    instances = jax.random.randint(k7, (batch,), 0, n_user)          # user ids (B,)

    # One-time layout prep (module "init"), not per forward call.
    params = prepare_ranknet_params(user_emb, item_emb, w1, b1, w2, b2)

    # Pure-JAX reference of the exact PyTorch forward (concat -> MLP -> squeeze).
    u = user_emb[instances]
    cat = jnp.concatenate(
        [jnp.repeat(u[:, None, :], m_item, axis=1),
         jnp.repeat(item_emb[None, :, :], batch, axis=0)], axis=2)    # (B, M, 2D)
    ref = (jnp.maximum(cat @ w1 + b1, 0.0) @ w2 + b2)[..., 0]         # (B, M)

    # Default config: tile_m = M, grid=(1,)  (v5e/v6e single-TC sweet spot).
    ratings = ranknet_forward(instances, params)
    ratings = jax.block_until_ready(ratings)
    assert ratings.shape == (batch, m_item)
    assert jnp.allclose(ratings, ref, atol=1e-4, rtol=1e-4)

    # v7x-style config: even parallel grid over item tiles.
    ratings2 = ranknet_forward(instances, params, tile_m=m_item // 2)
    ratings2 = jax.block_until_ready(ratings2)
    assert jnp.allclose(ratings2, ref, atol=1e-4, rtol=1e-4)

    print("KERNEL_OK")
</pallas_src>

<mosaic_0001>
module attributes {stable_mosaic.version = 11 : i64} {
  func.func @ranknet_kernel(%arg0: i32, %arg1: memref<32x8xf32, #tpu.memory_space<vmem>>, %arg2: memref<32x256xf32, #tpu.memory_space<vmem>>, %arg3: memref<32x32xf32, #tpu.memory_space<vmem>>, %arg4: memref<32x32xf32, #tpu.memory_space<vmem>>, %arg5: memref<32x1xf32, #tpu.memory_space<vmem>>, %arg6: memref<32x1xf32, #tpu.memory_space<vmem>>, %arg7: memref<1xf32, #tpu.memory_space<smem>>, %arg8: memref<8x256xf32, #tpu.memory_space<vmem>>) attributes {dimension_semantics = [#tpu.dimension_semantics<parallel>], iteration_bounds = array<i64: 1>, scalar_prefetch = 0 : i64, scratch_operands = 0 : i64, tpu.core_type = #tpu.core_type<tc>, window_params = [{pipeline_mode = #tpu.pipeline_mode<synchronous>, transform_indices = @transform_0, window_bounds = array<i64: 32, 8>}, {transform_indices = @transform_1, window_bounds = array<i64: 32, 256>}, {pipeline_mode = #tpu.pipeline_mode<synchronous>, transform_indices = @transform_2, window_bounds = array<i64: 32, 32>}, {pipeline_mode = #tpu.pipeline_mode<synchronous>, transform_indices = @transform_3, window_bounds = array<i64: 32, 32>}, {pipeline_mode = #tpu.pipeline_mode<synchronous>, transform_indices = @transform_4, window_bounds = array<i64: 32, 1>}, {pipeline_mode = #tpu.pipeline_mode<synchronous>, transform_indices = @transform_5, window_bounds = array<i64: 32, 1>}, {transform_indices = @transform_6, window_bounds = array<i64: 1>}, {transform_indices = @transform_7, window_bounds = array<i64: 8, 256>}]} {
    %c0 = arith.constant 0 : index
    %c0_0 = arith.constant 0 : index
    %0 = vector.load %arg4[%c0, %c0_0] : memref<32x32xf32, #tpu.memory_space<vmem>>, vector<32x32xf32>
    %c0_1 = arith.constant 0 : index
    %c0_2 = arith.constant 0 : index
    %1 = vector.load %arg2[%c0_1, %c0_2] : memref<32x256xf32, #tpu.memory_space<vmem>>, vector<32x256xf32>
    %cst = arith.constant dense<0.000000e+00> : vector<32x256xf32>
    %2 = tpu.matmul %0, %1, %cst {dimension_numbers = #tpu.dot_dimension_numbers<[1], [0], [0], [1], [0, 0, 1, 1], [], []>} : vector<32x32xf32>, vector<32x256xf32>, vector<32x256xf32> -> vector<32x256xf32>
    %c0_3 = arith.constant 0 : index
    %c0_4 = arith.constant 0 : index
    %3 = vector.load %arg3[%c0_3, %c0_4] : memref<32x32xf32, #tpu.memory_space<vmem>>, vector<32x32xf32>
    %c0_5 = arith.constant 0 : index
    %c0_6 = arith.constant 0 : index
    %4 = vector.load %arg1[%c0_5, %c0_6] : memref<32x8xf32, #tpu.memory_space<vmem>>, vector<32x8xf32>
    %cst_7 = arith.constant dense<0.000000e+00> : vector<32x8xf32>
    %5 = tpu.matmul %3, %4, %cst_7 {dimension_numbers = #tpu.dot_dimension_numbers<[1], [0], [0], [1], [0, 0, 1, 1], [], []>} : vector<32x32xf32>, vector<32x8xf32>, vector<32x8xf32> -> vector<32x8xf32>
    %c0_8 = arith.constant 0 : index
    %c0_9 = arith.constant 0 : index
    %6 = vector.load %arg5[%c0_8, %c0_9] : memref<32x1xf32, #tpu.memory_space<vmem>>, vector<32x1xf32>
    %7 = vector.broadcast %6 : vector<32x1xf32> to vector<32x8xf32>
    %8 = arith.addf %5, %7 : vector<32x8xf32>
    %c0_10 = arith.constant 0 : index
    %c0_11 = arith.constant 0 : index
    %9 = vector.load %arg6[%c0_10, %c0_11] : memref<32x1xf32, #tpu.memory_space<vmem>>, vector<32x1xf32>
    %10 = vector.shape_cast %9 : vector<32x1xf32> to vector<32x1xf32>
    %11 = vector.broadcast %10 : vector<32x1xf32> to vector<32x256xf32>
    %c0_12 = arith.constant 0 : index
    %12 = memref.load %arg7[%c0_12] : memref<1xf32, #tpu.memory_space<smem>>
    %13 = vector.extract_strided_slice %8 {offsets = [0, 0], sizes = [32, 1], strides = [1, 1]} : vector<32x8xf32> to vector<32x1xf32>
    %14 = vector.broadcast %13 : vector<32x1xf32> to vector<32x256xf32>
    %15 = arith.addf %2, %14 : vector<32x256xf32>
    %cst_13 = arith.constant 0.000000e+00 : f32
    %16 = vector.broadcast %cst_13 : f32 to vector<32x256xf32>
    %17 = arith.maximumf %15, %16 : vector<32x256xf32>
    %18 = arith.mulf %17, %11 : vector<32x256xf32>
    %cst_14 = arith.constant dense<0.000000e+00> : vector<256xf32>
    %19 = vector.multi_reduction <add>, %18, %cst_14 [0] : vector<32x256xf32> to vector<256xf32>
    %20 = vector.shape_cast %19 : vector<256xf32> to vector<1x256xf32>
    %21 = vector.extract_strided_slice %8 {offsets = [0, 1], sizes = [32, 1], strides = [1, 1]} : vector<32x8xf32> to vector<32x1xf32>
    %22 = vector.broadcast %21 : vector<32x1xf32> to vector<32x256xf32>
    %23 = arith.addf %2, %22 : vector<32x256xf32>
    %cst_15 = arith.constant 0.000000e+00 : f32
    %24 = vector.broadcast %cst_15 : f32 to vector<32x256xf32>
    %25 = arith.maximumf %23, %24 : vector<32x256xf32>
    %26 = arith.mulf %25, %11 : vector<32x256xf32>
    %cst_16 = arith.constant dense<0.000000e+00> : vector<256xf32>
    %27 = vector.multi_reduction <add>, %26, %cst_16 [0] : vector<32x256xf32> to vector<256xf32>
    %28 = vector.shape_cast %27 : vector<256xf32> to vector<1x256xf32>
    %29 = vector.extract_strided_slice %8 {offsets = [0, 2], sizes = [32, 1], strides = [1, 1]} : vector<32x8xf32> to vector<32x1xf32>
    %30 = vector.broadcast %29 : vector<32x1xf32> to vector<32x256xf32>
    %31 = arith.addf %2, %30 : vector<32x256xf32>
    %cst_17 = arith.constant 0.000000e+00 : f32
    %32 = vector.broadcast %cst_17 : f32 to vector<32x256xf32>
    %33 = arith.maximumf %31, %32 : vector<32x256xf32>
    %34 = arith.mulf %33, %11 : vector<32x256xf32>
    %cst_18 = arith.constant dense<0.000000e+00> : vector<256xf32>
    %35 = vector.multi_reduction <add>, %34, %cst_18 [0] : vector<32x256xf32> to vector<256xf32>
    %36 = vector.shape_cast %35 : vector<256xf32> to vector<1x256xf32>
    %37 = vector.extract_strided_slice %8 {offsets = [0, 3], sizes = [32, 1], strides = [1, 1]} : vector<32x8xf32> to vector<32x1xf32>
    %38 = vector.broadcast %37 : vector<32x1xf32> to vector<32x256xf32>
    %39 = arith.addf %2, %38 : vector<32x256xf32>
    %cst_19 = arith.constant 0.000000e+00 : f32
    %40 = vector.broadcast %cst_19 : f32 to vector<32x256xf32>
    %41 = arith.maximumf %39, %40 : vector<32x256xf32>
    %42 = arith.mulf %41, %11 : vector<32x256xf32>
    %cst_20 = arith.constant dense<0.000000e+00> : vector<256xf32>
    %43 = vector.multi_reduction <add>, %42, %cst_20 [0] : vector<32x256xf32> to vector<256xf32>
    %44 = vector.shape_cast %43 : vector<256xf32> to vector<1x256xf32>
    %45 = vector.extract_strided_slice %8 {offsets = [0, 4], sizes = [32, 1], strides = [1, 1]} : vector<32x8xf32> to vector<32x1xf32>
    %46 = vector.broadcast %45 : vector<32x1xf32> to vector<32x256xf32>
    %47 = arith.addf %2, %46 : vector<32x256xf32>
    %cst_21 = arith.constant 0.000000e+00 : f32
    %48 = vector.broadcast %cst_21 : f32 to vector<32x256xf32>
    %49 = arith.maximumf %47, %48 : vector<32x256xf32>
    %50 = arith.mulf %49, %11 : vector<32x256xf32>
    %cst_22 = arith.constant dense<0.000000e+00> : vector<256xf32>
    %51 = vector.multi_reduction <add>, %50, %cst_22 [0] : vector<32x256xf32> to vector<256xf32>
    %52 = vector.shape_cast %51 : vector<256xf32> to vector<1x256xf32>
    %53 = vector.extract_strided_slice %8 {offsets = [0, 5], sizes = [32, 1], strides = [1, 1]} : vector<32x8xf32> to vector<32x1xf32>
    %54 = vector.broadcast %53 : vector<32x1xf32> to vector<32x256xf32>
    %55 = arith.addf %2, %54 : vector<32x256xf32>
    %cst_23 = arith.constant 0.000000e+00 : f32
    %56 = vector.broadcast %cst_23 : f32 to vector<32x256xf32>
    %57 = arith.maximumf %55, %56 : vector<32x256xf32>
    %58 = arith.mulf %57, %11 : vector<32x256xf32>
    %cst_24 = arith.constant dense<0.000000e+00> : vector<256xf32>
    %59 = vector.multi_reduction <add>, %58, %cst_24 [0] : vector<32x256xf32> to vector<256xf32>
    %60 = vector.shape_cast %59 : vector<256xf32> to vector<1x256xf32>
    %61 = vector.extract_strided_slice %8 {offsets = [0, 6], sizes = [32, 1], strides = [1, 1]} : vector<32x8xf32> to vector<32x1xf32>
    %62 = vector.broadcast %61 : vector<32x1xf32> to vector<32x256xf32>
    %63 = arith.addf %2, %62 : vector<32x256xf32>
    %cst_25 = arith.constant 0.000000e+00 : f32
    %64 = vector.broadcast %cst_25 : f32 to vector<32x256xf32>
    %65 = arith.maximumf %63, %64 : vector<32x256xf32>
    %66 = arith.mulf %65, %11 : vector<32x256xf32>
    %cst_26 = arith.constant dense<0.000000e+00> : vector<256xf32>
    %67 = vector.multi_reduction <add>, %66, %cst_26 [0] : vector<32x256xf32> to vector<256xf32>
    %68 = vector.shape_cast %67 : vector<256xf32> to vector<1x256xf32>
    %69 = vector.extract_strided_slice %8 {offsets = [0, 7], sizes = [32, 1], strides = [1, 1]} : vector<32x8xf32> to vector<32x1xf32>
    %70 = vector.broadcast %69 : vector<32x1xf32> to vector<32x256xf32>
    %71 = arith.addf %2, %70 : vector<32x256xf32>
    %cst_27 = arith.constant 0.000000e+00 : f32
    %72 = vector.broadcast %cst_27 : f32 to vector<32x256xf32>
    %73 = arith.maximumf %71, %72 : vector<32x256xf32>
    %74 = arith.mulf %73, %11 : vector<32x256xf32>
    %cst_28 = arith.constant dense<0.000000e+00> : vector<256xf32>
    %75 = vector.multi_reduction <add>, %74, %cst_28 [0] : vector<32x256xf32> to vector<256xf32>
    %76 = vector.shape_cast %75 : vector<256xf32> to vector<1x256xf32>
    %77 = tpu.concatenate %20, %28, %36, %44, %52, %60, %68, %76 in 0 : vector<1x256xf32>, vector<1x256xf32>, vector<1x256xf32>, vector<1x256xf32>, vector<1x256xf32>, vector<1x256xf32>, vector<1x256xf32>, vector<1x256xf32> -> vector<8x256xf32>
    %78 = vector.broadcast %12 : f32 to vector<8x256xf32>
    %79 = arith.addf %77, %78 : vector<8x256xf32>
    %c0_29 = arith.constant 0 : index
    %c0_30 = arith.constant 0 : index
    %80 = vector.load %arg8[%c0_29, %c0_30] : memref<8x256xf32, #tpu.memory_space<vmem>>, vector<8x256xf32>
    tpu.vector_store %arg8[%c0_29, %c0_30], %79 {strides = array<i32>} : memref<8x256xf32, #tpu.memory_space<vmem>>, vector<8x256xf32>,
    return
  }
  func.func @transform_0(%arg0: i32) -> (i32, i32) {
    %c0_i32 = arith.constant 0 : i32
    %c0_i32_0 = arith.constant 0 : i32
    %c0_i32_1 = arith.constant 0 : i32
    return %c0_i32, %c0_i32_0 : i32, i32
  }
  func.func @transform_1(%arg0: i32) -> (i32, i32) {
    %c0_i32 = arith.constant 0 : i32
    %c0_i32_0 = arith.constant 0 : i32
    return %c0_i32, %arg0 : i32, i32
  }
  func.func @transform_2(%arg0: i32) -> (i32, i32) {
    %c0_i32 = arith.constant 0 : i32
    %c0_i32_0 = arith.constant 0 : i32
    %c0_i32_1 = arith.constant 0 : i32
    return %c0_i32, %c0_i32_0 : i32, i32
  }
  func.func @transform_3(%arg0: i32) -> (i32, i32) {
    %c0_i32 = arith.constant 0 : i32
    %c0_i32_0 = arith.constant 0 : i32
    %c0_i32_1 = arith.constant 0 : i32
    return %c0_i32, %c0_i32_0 : i32, i32
  }
  func.func @transform_4(%arg0: i32) -> (i32, i32) {
    %c0_i32 = arith.constant 0 : i32
    %c0_i32_0 = arith.constant 0 : i32
    %c0_i32_1 = arith.constant 0 : i32
    return %c0_i32, %c0_i32_0 : i32, i32
  }
  func.func @transform_5(%arg0: i32) -> (i32, i32) {
    %c0_i32 = arith.constant 0 : i32
    %c0_i32_0 = arith.constant 0 : i32
    %c0_i32_1 = arith.constant 0 : i32
    return %c0_i32, %c0_i32_0 : i32, i32
  }
  func.func @transform_6(%arg0: i32) -> i32 {
    %c0_i32 = arith.constant 0 : i32
    %c0_i32_0 = arith.constant 0 : i32
    return %c0_i32 : i32
  }
  func.func @transform_7(%arg0: i32) -> (i32, i32) {
    %c0_i32 = arith.constant 0 : i32
    %c0_i32_0 = arith.constant 0 : i32
    return %c0_i32, %arg0 : i32, i32
  }
}

</mosaic_0001>

<llo_original>
// kernel: tpu_custom_call.1
$region0: #{tpu_custom_call.1}
  #allocation0 [shape = 'u32[]', space=smem, size = 0x4, offset = 0x4, fixed_abs, tag = 'smem constant byte address 0x4 - core index']
  #allocation1 [shape = 'u32[144,128]{1,0:T(1,128)}', space=vmem, size = 0x12000, scoped, tag = 'internal scratch']
  #allocation2 [shape = 'f32[1]{0:T(128)S(6)}', space=smem, size = 0x200, scoped, tag = 'scoped memory for tpu_custom_call.1']
  %s0 = inlined_call_operand.vmem [shape: f32[32,8], index: 0, kind: input, shape index: {}]
  %s1 = inlined_call_operand.vmem [shape: f32[32,256], index: 1, kind: input, shape index: {}]
  %s2 = inlined_call_operand.vmem [shape: f32[32,32], index: 2, kind: input, shape index: {}]
  %s3 = inlined_call_operand.hbm [shape: f32[32,32], index: 3, kind: input, shape index: {}]
  %s4 = inlined_call_operand.vmem [shape: f32[32,1], index: 4, kind: input, shape index: {}]
  %s5 = inlined_call_operand.vmem [shape: f32[32,1], index: 5, kind: input, shape index: {}]
  %s6 = inlined_call_operand.<no memory space> [shape: f32[1], index: 6, kind: input, shape index: {}]
  %s7 = inlined_call_operand.hbm [shape: f32[8,256], index: 7, kind: output, shape index: {}]
  %s8 = sld [smem:[#allocation0]]
  $region42: #{tpu_custom_call.1} parent=0
    _
  %s10 = ssub.s32 1, %s8
  %s11 = scalar_select 0, %s10, %s8
  %12 = sst [smem:[#allocation2]] %s6
  $region1: #{tpu_custom_call.1} parent=0
    #allocation3 [shape = 'u8[16384]{0}', space=vmem, size = 0x4000, scoped, tag = 'input window, operand 3, single buffered']
    #allocation4 [shape = 's32[1]{0}', space=sflag, size = 0x4, scoped, tag = 'scoped memory for tpu_custom_call.1']
    #allocation5 [shape = 's32[1]{0}', space=sflag, size = 0x4, scoped, tag = 'scoped memory for tpu_custom_call.1']
    #allocation6 [shape = 'u8[8192]{0}', space=vmem, size = 0x2000, scoped, tag = 'output window, operand 0, single buffered']
    %13 = vsyncpa [#allocation4], 0
    %14 = vsyncpa [#allocation5], 0
    // Predicated region
    $region2: #{tpu_custom_call.1} parent=1 // pred_check
      _
    $region3: #{tpu_custom_call.1} parent=1 // pred_check_branch
      %16 = sbr.rel (0) target = $region5
    $region4: #{tpu_custom_call.1} parent=1 // pred_region
      _
    $region5: #{tpu_custom_call.1} parent=1 // pred_fallthru
      _
    // Predicated region
    $region6: #{tpu_custom_call.1} parent=1 // pred_check
      _
    $region7: #{tpu_custom_call.1} parent=1 // pred_check_branch
      %18 = sbr.rel (0) target = $region9
    $region8: #{tpu_custom_call.1} parent=1 // pred_region
      _
    $region9: #{tpu_custom_call.1} parent=1 // pred_fallthru
      _
    // Predicated region
    $region10: #{tpu_custom_call.1} parent=1 // pred_check
      _
    $region11: #{tpu_custom_call.1} parent=1 // pred_check_branch
      %20 = sbr.rel (0) target = $region13
    $region12: #{tpu_custom_call.1} parent=1 // pred_region
      _
    $region13: #{tpu_custom_call.1} parent=1 // pred_fallthru
      _
    // Predicated region
    $region14: #{tpu_custom_call.1} parent=1 // pred_check
      _
    $region15: #{tpu_custom_call.1} parent=1 // pred_check_branch
      %22 = sbr.rel (0) target = $region17
    $region16: #{tpu_custom_call.1} parent=1 // pred_region
      %s24 = ssub.s32 512, 512
      %25 = vsyncadd [#allocation4], %s24
      %s26 = sshll.u32 [#allocation3], 4
      %s27 = int_to_ptr.vmem [resolvable:$true] %s26
      %32 = dma.hbm_to_vmem [thread:$0]  %s3, 512, %s27, [#allocation4], 128, 128, 8
    $region17: #{tpu_custom_call.1} parent=1 // pred_fallthru
      _
    // Predicated region
    $region18: #{tpu_custom_call.1} parent=1 // pred_check
      _
    $region19: #{tpu_custom_call.1} parent=1 // pred_check_branch
      %34 = sbr.rel (0) target = $region21
    $region20: #{tpu_custom_call.1} parent=1 // pred_region
      _
    $region21: #{tpu_custom_call.1} parent=1 // pred_fallthru
      _
    // Predicated region
    $region22: #{tpu_custom_call.1} parent=1 // pred_check
      _
    $region23: #{tpu_custom_call.1} parent=1 // pred_check_branch
      %36 = sbr.rel (0) target = $region25
    $region24: #{tpu_custom_call.1} parent=1 // pred_region
      _
    $region25: #{tpu_custom_call.1} parent=1 // pred_fallthru
      _
    // Predicated region
    $region26: #{tpu_custom_call.1} parent=1 // pred_check
      _
    $region27: #{tpu_custom_call.1} parent=1 // pred_check_branch
      %38 = sbr.rel (0) target = $region29
    $region28: #{tpu_custom_call.1} parent=1 // pred_region
      _
    $region29: #{tpu_custom_call.1} parent=1 // pred_fallthru
      _
    // Predicated region
    $region30: #{tpu_custom_call.1} parent=1 // pred_check
      _
    $region31: #{tpu_custom_call.1} parent=1 // pred_check_branch
      %40 = sbr.rel (0) target = $region33
    $region32: #{tpu_custom_call.1} parent=1 // pred_region
      %41 = dma.done [#allocation4], 512
    $region33: #{tpu_custom_call.1} parent=1 // pred_fallthru
      _
    %v42 = vld [vmem:[#allocation3] sm:$0xff]
    %v43 = vld [vmem:[#allocation3 + $0x8] sm:$0xff]
    %v44 = vld [vmem:[#allocation3 + $0x10] sm:$0xff]
    %v45 = vld [vmem:[#allocation3 + $0x18] sm:$0xff]
    %v46 = vld [vmem:[%s1] sm:$0xff]
    %v47 = vld [vmem:[%s1 + $0x8] sm:$0xff]
    %v48 = vld [vmem:[%s1 + $0x10] sm:$0xff]
    %v49 = vld [vmem:[%s1 + $0x18] sm:$0xff]
    %v50 = vld [vmem:[%s1 + $0x20] sm:$0xff]
    %v51 = vld [vmem:[%s1 + $0x28] sm:$0xff]
    %v52 = vld [vmem:[%s1 + $0x30] sm:$0xff]
    %v53 = vld [vmem:[%s1 + $0x38] sm:$0xff]
    %vm54 = vcmask 261120
    %v56 = vsel %vm54, %v42, 0
    %v59 = vsel %vm54, %v43, 0
    %v62 = vsel %vm54, %v44, 0
    %v65 = vsel %vm54, %v45, 0
    %67 = vmatprep.subr.mxu0 %v47
    %68 = vmatpush1.msra.mxu0 %v46
    %69 = vmatprep.subr.mxu0 %v49
    %70 = vmatpush1.msra.mxu0 %v48
    %71 = vmatprep.subr.mxu0 %v51
    %72 = vmatpush1.msra.mxu0 %v50
    %73 = vmatprep.subr.mxu0 %v53
    %74 = vmatpush1.msra.mxu0 %v52
    %75 = vmatprep.subr.mxu0 0.0
    %76 = vmatpush1.msra.mxu0 0.0
    %77 = vmatprep.subr.mxu0 0.0
    %78 = vmatpush1.msra.mxu0 0.0
    %79 = vmatprep.subr.mxu0 0.0
    %80 = vmatpush1.msra.mxu0 0.0
    %81 = vmatprep.subr.mxu0 0.0
    %82 = vmatpush1.msra.mxu0 0.0
    %83 = vmatprep.subr.mxu0 0.0
    %84 = vmatpush1.msra.mxu0 0.0
    %85 = vmatprep.subr.mxu0 0.0
    %86 = vmatpush1.msra.mxu0 0.0
    %87 = vmatprep.subr.mxu0 0.0
    %88 = vmatpush1.msra.mxu0 0.0
    %89 = vmatprep.subr.mxu0 0.0
    %90 = vmatpush1.msra.mxu0 0.0
    %91 = vmatprep.subr.mxu0 0.0
    %92 = vmatpush1.msra.mxu0 0.0
    %93 = vmatprep.subr.mxu0 0.0
    %94 = vmatpush1.msra.mxu0 0.0
    %95 = vmatprep.subr.mxu0 0.0
    %96 = vmatpush1.msra.mxu0 0.0
    %97 = vmatprep.subr.mxu0 0.0
    %98 = vmatpush1.msra.mxu0 0.0
    %99 = vmatprep.subr.mxu0 0.0
    %100 = vmatpush1.msra.mxu0 0.0
    %101 = vmatprep.subr.mxu0 0.0
    %102 = vmatpush1.msra.mxu0 0.0
    %103 = vmatprep.subr.mxu0 0.0
    %104 = vmatpush1.msra.mxu0 0.0
    %105 = vmatprep.subr.mxu0 0.0
    %106 = vmatpush1.msra.mxu0 0.0
    %107 = vmatprep.subr.mxu0 0.0
    %108 = vmatpush1.msra.mxu0 0.0
    %109 = vmatprep.subr.mxu0 0.0
    %110 = vmatpush1.msra.mxu0 0.0
    %111 = vmatprep.subr.mxu0 0.0
    %112 = vmatpush1.msra.mxu0 0.0
    %113 = vmatprep.subr.mxu0 0.0
    %114 = vmatpush1.msra.mxu0 0.0
    %115 = vmatprep.subr.mxu0 0.0
    %116 = vmatpush1.msra.mxu0 0.0
    %117 = vmatprep.subr.mxu0 0.0
    %118 = vmatpush1.msra.mxu0 0.0
    %119 = vmatprep.subr.mxu0 0.0
    %120 = vmatpush1.msra.mxu0 0.0
    %121 = vmatprep.subr.mxu0 0.0
    %122 = vmatpush1.msra.mxu0 0.0
    %123 = vmatprep.subr.mxu0 0.0
    %124 = vmatpush1.msra.mxu0 0.0
    %125 = vmatprep.subr.mxu0 0.0
    %126 = vmatpush1.msra.mxu0 0.0
    %127 = vmatprep.subr.mxu0 0.0
    %128 = vmatpush1.msra.mxu0 0.0
    %129 = vmatprep.subr.mxu0 0.0
    %130 = vmatpush1.msra.mxu0 0.0
    %131 = vmatprep.mubr.f32.mxu0 0.0
    %132 = vmatmul.mubr.f32.gmra.mrb[0].mxu0 %v56
    %v133 = vpop.f32.mrb[0].mxu0
    %v134 = vadd.f32 0.0, %v133
    %v135 = vpop.f32.mrb[0].mxu0
    %v136 = vadd.f32 0.0, %v135
    %137 = vmatprep.mubr.f32.mxu0 0.0
    %138 = vmatmul.mubr.f32.gmra.mrb[0].mxu0 %v59
    %v139 = vpop.f32.mrb[0].mxu0
    %v140 = vadd.f32 0.0, %v139
    %v141 = vpop.f32.mrb[0].mxu0
    %v142 = vadd.f32 0.0, %v141
    %143 = vmatprep.mubr.f32.mxu0 0.0
    %144 = vmatmul.mubr.f32.gmra.mrb[0].mxu0 %v62
    %v145 = vpop.f32.mrb[0].mxu0
    %v146 = vadd.f32 0.0, %v145
    %v147 = vpop.f32.mrb[0].mxu0
    %v148 = vadd.f32 0.0, %v147
    %149 = vmatprep.mubr.f32.mxu0 0.0
    %150 = vmatmul.mubr.f32.gmra.mrb[0].mxu0 %v65
    %v151 = vpop.f32.mrb[0].mxu0
    %v152 = vadd.f32 0.0, %v151
    %v153 = vpop.f32.mrb[0].mxu0
    %v154 = vadd.f32 0.0, %v153
    %155 = vdwg.mxu0
    %v156 = vld [vmem:[%s2] sm:$0xff]
    %v157 = vld [vmem:[%s2 + $0x8] sm:$0xff]
    %v158 = vld [vmem:[%s2 + $0x10] sm:$0xff]
    %v159 = vld [vmem:[%s2 + $0x18] sm:$0xff]
    %v160 = vld [vmem:[%s0] sm:$0xff]
    %v161 = vld [vmem:[%s0 + $0x8] sm:$0xff]
    %v162 = vld [vmem:[%s0 + $0x10] sm:$0xff]
    %v163 = vld [vmem:[%s0 + $0x18] sm:$0xff]
    %v164 = vld [vmem:[%s4] sm:$0xff]
    %v165 = vld [vmem:[%s4 + $0x8] sm:$0xff]
    %v166 = vld [vmem:[%s4 + $0x10] sm:$0xff]
    %v167 = vld [vmem:[%s4 + $0x18] sm:$0xff]
    %169 = vset.pattern.permute.xlu0 0
    %170 = vperm.xlu0 %169, %v164
    %v171 = vpop.permute.xlu0 %170
    %174 = vset.pattern.permute.xlu0 0
    %175 = vperm.xlu0 %174, %v165
    %v176 = vpop.permute.xlu0 %175
    %179 = vset.pattern.permute.xlu0 0
    %180 = vperm.xlu0 %179, %v166
    %v181 = vpop.permute.xlu0 %180
    %184 = vset.pattern.permute.xlu0 0
    %185 = vperm.xlu0 %184, %v167
    %v186 = vpop.permute.xlu0 %185
    %v189 = vsel %vm54, %v156, 0
    %v192 = vsel %vm54, %v157, 0
    %v195 = vsel %vm54, %v158, 0
    %v198 = vsel %vm54, %v159, 0
    %200 = vmatprep.subr.mxu0 0.0
    %201 = vmatpush1.msra.mxu0 %v160
    %202 = vmatprep.subr.mxu0 0.0
    %203 = vmatpush1.msra.mxu0 %v161
    %204 = vmatprep.subr.mxu0 0.0
    %205 = vmatpush1.msra.mxu0 %v162
    %206 = vmatprep.subr.mxu0 0.0
    %207 = vmatpush1.msra.mxu0 %v163
    %208 = vmatprep.subr.mxu0 0.0
    %209 = vmatpush1.msra.mxu0 0.0
    %210 = vmatprep.subr.mxu0 0.0
    %211 = vmatpush1.msra.mxu0 0.0
    %212 = vmatprep.subr.mxu0 0.0
    %213 = vmatpush1.msra.mxu0 0.0
    %214 = vmatprep.subr.mxu0 0.0
    %215 = vmatpush1.msra.mxu0 0.0
    %216 = vmatprep.subr.mxu0 0.0
    %217 = vmatpush1.msra.mxu0 0.0
    %218 = vmatprep.subr.mxu0 0.0
    %219 = vmatpush1.msra.mxu0 0.0
    %220 = vmatprep.subr.mxu0 0.0
    %221 = vmatpush1.msra.mxu0 0.0
    %222 = vmatprep.subr.mxu0 0.0
    %223 = vmatpush1.msra.mxu0 0.0
    %224 = vmatprep.subr.mxu0 0.0
    %225 = vmatpush1.msra.mxu0 0.0
    %226 = vmatprep.subr.mxu0 0.0
    %227 = vmatpush1.msra.mxu0 0.0
    %228 = vmatprep.subr.mxu0 0.0
    %229 = vmatpush1.msra.mxu0 0.0
    %230 = vmatprep.subr.mxu0 0.0
    %231 = vmatpush1.msra.mxu0 0.0
    %232 = vmatprep.subr.mxu0 0.0
    %233 = vmatpush1.msra.mxu0 0.0
    %234 = vmatprep.subr.mxu0 0.0
    %235 = vmatpush1.msra.mxu0 0.0
    %236 = vmatprep.subr.mxu0 0.0
    %237 = vmatpush1.msra.mxu0 0.0
    %238 = vmatprep.subr.mxu0 0.0
    %239 = vmatpush1.msra.mxu0 0.0
    %240 = vmatprep.subr.mxu0 0.0
    %241 = vmatpush1.msra.mxu0 0.0
    %242 = vmatprep.subr.mxu0 0.0
    %243 = vmatpush1.msra.mxu0 0.0
    %244 = vmatprep.subr.mxu0 0.0
    %245 = vmatpush1.msra.mxu0 0.0
    %246 = vmatprep.subr.mxu0 0.0
    %247 = vmatpush1.msra.mxu0 0.0
    %248 = vmatprep.subr.mxu0 0.0
    %249 = vmatpush1.msra.mxu0 0.0
    %250 = vmatprep.subr.mxu0 0.0
    %251 = vmatpush1.msra.mxu0 0.0
    %252 = vmatprep.subr.mxu0 0.0
    %253 = vmatpush1.msra.mxu0 0.0
    %254 = vmatprep.subr.mxu0 0.0
    %255 = vmatpush1.msra.mxu0 0.0
    %256 = vmatprep.subr.mxu0 0.0
    %257 = vmatpush1.msra.mxu0 0.0
    %258 = vmatprep.subr.mxu0 0.0
    %259 = vmatpush1.msra.mxu0 0.0
    %260 = vmatprep.subr.mxu0 0.0
    %261 = vmatpush1.msra.mxu0 0.0
    %262 = vmatprep.subr.mxu0 0.0
    %263 = vmatpush1.msra.mxu0 0.0
    %264 = vmatprep.mubr.f32.mxu0 0.0
    %265 = vmatmul.mubr.f32.gmra.mrb[0].mxu0 %v189
    %v266 = vpop.f32.mrb[0].mxu0
    %v267 = vadd.f32 %v171, %v266
    %v268 = vpop.f32.mrb[0].mxu0
    %269 = vmatprep.mubr.f32.mxu0 0.0
    %270 = vmatmul.mubr.f32.gmra.mrb[0].mxu0 %v192
    %v271 = vpop.f32.mrb[0].mxu0
    %v272 = vadd.f32 %v176, %v271
    %v273 = vpop.f32.mrb[0].mxu0
    %274 = vmatprep.mubr.f32.mxu0 0.0
    %275 = vmatmul.mubr.f32.gmra.mrb[0].mxu0 %v195
    %v276 = vpop.f32.mrb[0].mxu0
    %v277 = vadd.f32 %v181, %v276
    %v278 = vpop.f32.mrb[0].mxu0
    %279 = vmatprep.mubr.f32.mxu0 0.0
    %280 = vmatmul.mubr.f32.gmra.mrb[0].mxu0 %v198
    %v281 = vpop.f32.mrb[0].mxu0
    %v282 = vadd.f32 %v186, %v281
    %v283 = vpop.f32.mrb[0].mxu0
    %284 = vdwg.mxu0
    %v285 = vld [vmem:[%s5] sm:$0xff]
    %v286 = vld [vmem:[%s5 + $0x8] sm:$0xff]
    %v287 = vld [vmem:[%s5 + $0x10] sm:$0xff]
    %v288 = vld [vmem:[%s5 + $0x18] sm:$0xff]
    %290 = vset.pattern.permute.xlu0 0
    %291 = vperm.xlu0 %290, %v285
    %v292 = vpop.permute.xlu0 %291
    %295 = vset.pattern.permute.xlu0 0
    %296 = vperm.xlu0 %295, %v286
    %v297 = vpop.permute.xlu0 %296
    %300 = vset.pattern.permute.xlu0 0
    %301 = vperm.xlu0 %300, %v287
    %v302 = vpop.permute.xlu0 %301
    %305 = vset.pattern.permute.xlu0 0
    %306 = vperm.xlu0 %305, %v288
    %v307 = vpop.permute.xlu0 %306
    %s309 = sld [smem:[#allocation2]]
    %311 = vset.pattern.permute.xlu0 0
    %312 = vperm.xlu0 %311, %v267
    %v313 = vpop.permute.xlu0 %312
    %316 = vset.pattern.permute.xlu0 0
    %317 = vperm.xlu0 %316, %v272
    %v318 = vpop.permute.xlu0 %317
    %321 = vset.pattern.permute.xlu0 0
    %322 = vperm.xlu0 %321, %v277
    %v323 = vpop.permute.xlu0 %322
    %326 = vset.pattern.permute.xlu0 0
    %327 = vperm.xlu0 %326, %v282
    %v328 = vpop.permute.xlu0 %327
    %v330 = vadd.f32 %v134, %v313
    %v331 = vadd.f32 %v136, %v313
    %v332 = vadd.f32 %v140, %v318
    %v333 = vadd.f32 %v142, %v318
    %v334 = vadd.f32 %v146, %v323
    %v335 = vadd.f32 %v148, %v323
    %v336 = vadd.f32 %v152, %v328
    %v337 = vadd.f32 %v154, %v328
    %v338 = vmax.f32 %v330, 0.0
    %v339 = vmax.f32 %v331, 0.0
    %v340 = vmax.f32 %v332, 0.0
    %v341 = vmax.f32 %v333, 0.0
    %v342 = vmax.f32 %v334, 0.0
    %v343 = vmax.f32 %v335, 0.0
    %v344 = vmax.f32 %v336, 0.0
    %v345 = vmax.f32 %v337, 0.0
    %v346 = vmul.f32 %v338, %v292
    %v347 = vmul.f32 %v339, %v292
    %v348 = vmul.f32 %v340, %v297
    %v349 = vmul.f32 %v341, %v297
    %v350 = vmul.f32 %v342, %v302
    %v351 = vmul.f32 %v343, %v302
    %v352 = vmul.f32 %v344, %v307
    %v353 = vmul.f32 %v345, %v307
    %v354 = vadd.f32 %v346, %v348
    %v355 = vadd.f32 %v354, %v350
    %v356 = vadd.f32 %v355, %v352
    %v357 = vrot.slane %v356, 4
    %v358 = vadd.f32 %v356, %v357
    %v359 = vrot.slane %v358, 2
    %v360 = vadd.f32 %v358, %v359
    %v361 = vrot.slane %v360, 1
    %v362 = vadd.f32 %v360, %v361
    %v363 = vadd.f32 %v347, %v349
    %v364 = vadd.f32 %v363, %v351
    %v365 = vadd.f32 %v364, %v353
    %v366 = vrot.slane %v365, 4
    %v367 = vadd.f32 %v365, %v366
    %v368 = vrot.slane %v367, 2
    %v369 = vadd.f32 %v367, %v368
    %v370 = vrot.slane %v369, 1
    %v371 = vadd.f32 %v369, %v370
    %372 = vset.pattern.permute.xlu0 1
    %373 = vperm.xlu0 %372, %v267
    %v374 = vpop.permute.xlu0 %373
    %376 = vset.pattern.permute.xlu0 1
    %377 = vperm.xlu0 %376, %v272
    %v378 = vpop.permute.xlu0 %377
    %380 = vset.pattern.permute.xlu0 1
    %381 = vperm.xlu0 %380, %v277
    %v382 = vpop.permute.xlu0 %381
    %384 = vset.pattern.permute.xlu0 1
    %385 = vperm.xlu0 %384, %v282
    %v386 = vpop.permute.xlu0 %385
    %v388 = vadd.f32 %v134, %v374
    %v389 = vadd.f32 %v136, %v374
    %v390 = vadd.f32 %v140, %v378
    %v391 = vadd.f32 %v142, %v378
    %v392 = vadd.f32 %v146, %v382
    %v393 = vadd.f32 %v148, %v382
    %v394 = vadd.f32 %v152, %v386
    %v395 = vadd.f32 %v154, %v386
    %v396 = vmax.f32 %v388, 0.0
    %v397 = vmax.f32 %v389, 0.0
    %v398 = vmax.f32 %v390, 0.0
    %v399 = vmax.f32 %v391, 0.0
    %v400 = vmax.f32 %v392, 0.0
    %v401 = vmax.f32 %v393, 0.0
    %v402 = vmax.f32 %v394, 0.0
    %v403 = vmax.f32 %v395, 0.0
    %v404 = vmul.f32 %v396, %v292
    %v405 = vmul.f32 %v397, %v292
    %v406 = vmul.f32 %v398, %v297
    %v407 = vmul.f32 %v399, %v297
    %v408 = vmul.f32 %v400, %v302
    %v409 = vmul.f32 %v401, %v302
    %v410 = vmul.f32 %v402, %v307
    %v411 = vmul.f32 %v403, %v307
    %v412 = vadd.f32 %v404, %v406
    %v413 = vadd.f32 %v412, %v408
    %v414 = vadd.f32 %v413, %v410
    %v415 = vrot.slane %v414, 4
    %v416 = vadd.f32 %v414, %v415
    %v417 = vrot.slane %v416, 2
    %v418 = vadd.f32 %v416, %v417
    %v419 = vrot.slane %v418, 1
    %v420 = vadd.f32 %v418, %v419
    %v421 = vadd.f32 %v405, %v407
    %v422 = vadd.f32 %v421, %v409
    %v423 = vadd.f32 %v422, %v411
    %v424 = vrot.slane %v423, 4
    %v425 = vadd.f32 %v423, %v424
    %v426 = vrot.slane %v425, 2
    %v427 = vadd.f32 %v425, %v426
    %v428 = vrot.slane %v427, 1
    %v429 = vadd.f32 %v427, %v428
    %430 = vset.pattern.permute.xlu0 2
    %431 = vperm.xlu0 %430, %v267
    %v432 = vpop.permute.xlu0 %431
    %434 = vset.pattern.permute.xlu0 2
    %435 = vperm.xlu0 %434, %v272
    %v436 = vpop.permute.xlu0 %435
    %438 = vset.pattern.permute.xlu0 2
    %439 = vperm.xlu0 %438, %v277
    %v440 = vpop.permute.xlu0 %439
    %442 = vset.pattern.permute.xlu0 2
    %443 = vperm.xlu0 %442, %v282
    %v444 = vpop.permute.xlu0 %443
    %v446 = vadd.f32 %v134, %v432
    %v447 = vadd.f32 %v136, %v432
    %v448 = vadd.f32 %v140, %v436
    %v449 = vadd.f32 %v142, %v436
    %v450 = vadd.f32 %v146, %v440
    %v451 = vadd.f32 %v148, %v440
    %v452 = vadd.f32 %v152, %v444
    %v453 = vadd.f32 %v154, %v444
    %v454 = vmax.f32 %v446, 0.0
    %v455 = vmax.f32 %v447, 0.0
    %v456 = vmax.f32 %v448, 0.0
    %v457 = vmax.f32 %v449, 0.0
    %v458 = vmax.f32 %v450, 0.0
    %v459 = vmax.f32 %v451, 0.0
    %v460 = vmax.f32 %v452, 0.0
    %v461 = vmax.f32 %v453, 0.0
    %v462 = vmul.f32 %v454, %v292
    %v463 = vmul.f32 %v455, %v292
    %v464 = vmul.f32 %v456, %v297
    %v465 = vmul.f32 %v457, %v297
    %v466 = vmul.f32 %v458, %v302
    %v467 = vmul.f32 %v459, %v302
    %v468 = vmul.f32 %v460, %v307
    %v469 = vmul.f32 %v461, %v307
    %v470 = vadd.f32 %v462, %v464
    %v471 = vadd.f32 %v470, %v466
    %v472 = vadd.f32 %v471, %v468
    %v473 = vrot.slane %v472, 4
    %v474 = vadd.f32 %v472, %v473
    %v475 = vrot.slane %v474, 2
    %v476 = vadd.f32 %v474, %v475
    %v477 = vrot.slane %v476, 1
    %v478 = vadd.f32 %v476, %v477
    %v479 = vadd.f32 %v463, %v465
    %v480 = vadd.f32 %v479, %v467
    %v481 = vadd.f32 %v480, %v469
    %v482 = vrot.slane %v481, 4
    %v483 = vadd.f32 %v481, %v482
    %v484 = vrot.slane %v483, 2
    %v485 = vadd.f32 %v483, %v484
    %v486 = vrot.slane %v485, 1
    %v487 = vadd.f32 %v485, %v486
    %488 = vset.pattern.permute.xlu0 3
    %489 = vperm.xlu0 %488, %v267
    %v490 = vpop.permute.xlu0 %489
    %492 = vset.pattern.permute.xlu0 3
    %493 = vperm.xlu0 %492, %v272
    %v494 = vpop.permute.xlu0 %493
    %496 = vset.pattern.permute.xlu0 3
    %497 = vperm.xlu0 %496, %v277
    %v498 = vpop.permute.xlu0 %497
    %500 = vset.pattern.permute.xlu0 3
    %501 = vperm.xlu0 %500, %v282
    %v502 = vpop.permute.xlu0 %501
    %v504 = vadd.f32 %v134, %v490
    %v505 = vadd.f32 %v136, %v490
    %v506 = vadd.f32 %v140, %v494
    %v507 = vadd.f32 %v142, %v494
    %v508 = vadd.f32 %v146, %v498
    %v509 = vadd.f32 %v148, %v498
    %v510 = vadd.f32 %v152, %v502
    %v511 = vadd.f32 %v154, %v502
    %v512 = vmax.f32 %v504, 0.0
    %v513 = vmax.f32 %v505, 0.0
    %v514 = vmax.f32 %v506, 0.0
    %v515 = vmax.f32 %v507, 0.0
    %v516 = vmax.f32 %v508, 0.0
    %v517 = vmax.f32 %v509, 0.0
    %v518 = vmax.f32 %v510, 0.0
    %v519 = vmax.f32 %v511, 0.0
    %v520 = vmul.f32 %v512, %v292
    %v521 = vmul.f32 %v513, %v292
    %v522 = vmul.f32 %v514, %v297
    %v523 = vmul.f32 %v515, %v297
    %v524 = vmul.f32 %v516, %v302
    %v525 = vmul.f32 %v517, %v302
    %v526 = vmul.f32 %v518, %v307
    %v527 = vmul.f32 %v519, %v307
    %v528 = vadd.f32 %v520, %v522
    %v529 = vadd.f32 %v528, %v524
    %v530 = vadd.f32 %v529, %v526
    %v531 = vrot.slane %v530, 4
    %v532 = vadd.f32 %v530, %v531
    %v533 = vrot.slane %v532, 2
    %v534 = vadd.f32 %v532, %v533
    %v535 = vrot.slane %v534, 1
    %v536 = vadd.f32 %v534, %v535
    %v537 = vadd.f32 %v521, %v523
    %v538 = vadd.f32 %v537, %v525
    %v539 = vadd.f32 %v538, %v527
    %v540 = vrot.slane %v539, 4
    %v541 = vadd.f32 %v539, %v540
    %v542 = vrot.slane %v541, 2
    %v543 = vadd.f32 %v541, %v542
    %v544 = vrot.slane %v543, 1
    %v545 = vadd.f32 %v543, %v544
    %546 = vset.pattern.permute.xlu0 4
    %547 = vperm.xlu0 %546, %v267
    %v548 = vpop.permute.xlu0 %547
    %550 = vset.pattern.permute.xlu0 4
    %551 = vperm.xlu0 %550, %v272
    %v552 = vpop.permute.xlu0 %551
    %554 = vset.pattern.permute.xlu0 4
    %555 = vperm.xlu0 %554, %v277
    %v556 = vpop.permute.xlu0 %555
    %558 = vset.pattern.permute.xlu0 4
    %559 = vperm.xlu0 %558, %v282
    %v560 = vpop.permute.xlu0 %559
    %v562 = vadd.f32 %v134, %v548
    %v563 = vadd.f32 %v136, %v548
    %v564 = vadd.f32 %v140, %v552
    %v565 = vadd.f32 %v142, %v552
    %v566 = vadd.f32 %v146, %v556
    %v567 = vadd.f32 %v148, %v556
    %v568 = vadd.f32 %v152, %v560
    %v569 = vadd.f32 %v154, %v560
    %v570 = vmax.f32 %v562, 0.0
    %v571 = vmax.f32 %v563, 0.0
    %v572 = vmax.f32 %v564, 0.0
    %v573 = vmax.f32 %v565, 0.0
    %v574 = vmax.f32 %v566, 0.0
    %v575 = vmax.f32 %v567, 0.0
    %v576 = vmax.f32 %v568, 0.0
    %v577 = vmax.f32 %v569, 0.0
    %v578 = vmul.f32 %v570, %v292
    %v579 = vmul.f32 %v571, %v292
    %v580 = vmul.f32 %v572, %v297
    %v581 = vmul.f32 %v573, %v297
    %v582 = vmul.f32 %v574, %v302
    %v583 = vmul.f32 %v575, %v302
    %v584 = vmul.f32 %v576, %v307
    %v585 = vmul.f32 %v577, %v307
    %v586 = vadd.f32 %v578, %v580
    %v587 = vadd.f32 %v586, %v582
    %v588 = vadd.f32 %v587, %v584
    %v589 = vrot.slane %v588, 4
    %v590 = vadd.f32 %v588, %v589
    %v591 = vrot.slane %v590, 2
    %v592 = vadd.f32 %v590, %v591
    %v593 = vrot.slane %v592, 1
    %v594 = vadd.f32 %v592, %v593
    %v595 = vadd.f32 %v579, %v581
    %v596 = vadd.f32 %v595, %v583
    %v597 = vadd.f32 %v596, %v585
    %v598 = vrot.slane %v597, 4
    %v599 = vadd.f32 %v597, %v598
    %v600 = vrot.slane %v599, 2
    %v601 = vadd.f32 %v599, %v600
    %v602 = vrot.slane %v601, 1
    %v603 = vadd.f32 %v601, %v602
    %604 = vset.pattern.permute.xlu0 5
    %605 = vperm.xlu0 %604, %v267
    %v606 = vpop.permute.xlu0 %605
    %608 = vset.pattern.permute.xlu0 5
    %609 = vperm.xlu0 %608, %v272
    %v610 = vpop.permute.xlu0 %609
    %612 = vset.pattern.permute.xlu0 5
    %613 = vperm.xlu0 %612, %v277
    %v614 = vpop.permute.xlu0 %613
    %616 = vset.pattern.permute.xlu0 5
    %617 = vperm.xlu0 %616, %v282
    %v618 = vpop.permute.xlu0 %617
    %v620 = vadd.f32 %v134, %v606
    %v621 = vadd.f32 %v136, %v606
    %v622 = vadd.f32 %v140, %v610
    %v623 = vadd.f32 %v142, %v610
    %v624 = vadd.f32 %v146, %v614
    %v625 = vadd.f32 %v148, %v614
    %v626 = vadd.f32 %v152, %v618
    %v627 = vadd.f32 %v154, %v618
    %v628 = vmax.f32 %v620, 0.0
    %v629 = vmax.f32 %v621, 0.0
    %v630 = vmax.f32 %v622, 0.0
    %v631 = vmax.f32 %v623, 0.0
    %v632 = vmax.f32 %v624, 0.0
    %v633 = vmax.f32 %v625, 0.0
    %v634 = vmax.f32 %v626, 0.0
    %v635 = vmax.f32 %v627, 0.0
    %v636 = vmul.f32 %v628, %v292
    %v637 = vmul.f32 %v629, %v292
    %v638 = vmul.f32 %v630, %v297
    %v639 = vmul.f32 %v631, %v297
    %v640 = vmul.f32 %v632, %v302
    %v641 = vmul.f32 %v633, %v302
    %v642 = vmul.f32 %v634, %v307
    %v643 = vmul.f32 %v635, %v307
    %v644 = vadd.f32 %v636, %v638
    %v645 = vadd.f32 %v644, %v640
    %v646 = vadd.f32 %v645, %v642
    %v647 = vrot.slane %v646, 4
    %v648 = vadd.f32 %v646, %v647
    %v649 = vrot.slane %v648, 2
    %v650 = vadd.f32 %v648, %v649
    %v651 = vrot.slane %v650, 1
    %v652 = vadd.f32 %v650, %v651
    %v653 = vadd.f32 %v637, %v639
    %v654 = vadd.f32 %v653, %v641
    %v655 = vadd.f32 %v654, %v643
    %v656 = vrot.slane %v655, 4
    %v657 = vadd.f32 %v655, %v656
    %v658 = vrot.slane %v657, 2
    %v659 = vadd.f32 %v657, %v658
    %v660 = vrot.slane %v659, 1
    %v661 = vadd.f32 %v659, %v660
    %662 = vset.pattern.permute.xlu0 6
    %663 = vperm.xlu0 %662, %v267
    %v664 = vpop.permute.xlu0 %663
    %666 = vset.pattern.permute.xlu0 6
    %667 = vperm.xlu0 %666, %v272
    %v668 = vpop.permute.xlu0 %667
    %670 = vset.pattern.permute.xlu0 6
    %671 = vperm.xlu0 %670, %v277
    %v672 = vpop.permute.xlu0 %671
    %674 = vset.pattern.permute.xlu0 6
    %675 = vperm.xlu0 %674, %v282
    %v676 = vpop.permute.xlu0 %675
    %v678 = vadd.f32 %v134, %v664
    %v679 = vadd.f32 %v136, %v664
    %v680 = vadd.f32 %v140, %v668
    %v681 = vadd.f32 %v142, %v668
    %v682 = vadd.f32 %v146, %v672
    %v683 = vadd.f32 %v148, %v672
    %v684 = vadd.f32 %v152, %v676
    %v685 = vadd.f32 %v154, %v676
    %v686 = vmax.f32 %v678, 0.0
    %v687 = vmax.f32 %v679, 0.0
    %v688 = vmax.f32 %v680, 0.0
    %v689 = vmax.f32 %v681, 0.0
    %v690 = vmax.f32 %v682, 0.0
    %v691 = vmax.f32 %v683, 0.0
    %v692 = vmax.f32 %v684, 0.0
    %v693 = vmax.f32 %v685, 0.0
    %v694 = vmul.f32 %v686, %v292
    %v695 = vmul.f32 %v687, %v292
    %v696 = vmul.f32 %v688, %v297
    %v697 = vmul.f32 %v689, %v297
    %v698 = vmul.f32 %v690, %v302
    %v699 = vmul.f32 %v691, %v302
    %v700 = vmul.f32 %v692, %v307
    %v701 = vmul.f32 %v693, %v307
    %v702 = vadd.f32 %v694, %v696
    %v703 = vadd.f32 %v702, %v698
    %v704 = vadd.f32 %v703, %v700
    %v705 = vrot.slane %v704, 4
    %v706 = vadd.f32 %v704, %v705
    %v707 = vrot.slane %v706, 2
    %v708 = vadd.f32 %v706, %v707
    %v709 = vrot.slane %v708, 1
    %v710 = vadd.f32 %v708, %v709
    %v711 = vadd.f32 %v695, %v697
    %v712 = vadd.f32 %v711, %v699
    %v713 = vadd.f32 %v712, %v701
    %v714 = vrot.slane %v713, 4
    %v715 = vadd.f32 %v713, %v714
    %v716 = vrot.slane %v715, 2
    %v717 = vadd.f32 %v715, %v716
    %v718 = vrot.slane %v717, 1
    %v719 = vadd.f32 %v717, %v718
    %720 = vset.pattern.permute.xlu0 7
    %721 = vperm.xlu0 %720, %v267
    %v722 = vpop.permute.xlu0 %721
    %724 = vset.pattern.permute.xlu0 7
    %725 = vperm.xlu0 %724, %v272
    %v726 = vpop.permute.xlu0 %725
    %728 = vset.pattern.permute.xlu0 7
    %729 = vperm.xlu0 %728, %v277
    %v730 = vpop.permute.xlu0 %729
    %732 = vset.pattern.permute.xlu0 7
    %733 = vperm.xlu0 %732, %v282
    %v734 = vpop.permute.xlu0 %733
    %v736 = vadd.f32 %v134, %v722
    %v737 = vadd.f32 %v136, %v722
    %v738 = vadd.f32 %v140, %v726
    %v739 = vadd.f32 %v142, %v726
    %v740 = vadd.f32 %v146, %v730
    %v741 = vadd.f32 %v148, %v730
    %v742 = vadd.f32 %v152, %v734
    %v743 = vadd.f32 %v154, %v734
    %v744 = vmax.f32 %v736, 0.0
    %v745 = vmax.f32 %v737, 0.0
    %v746 = vmax.f32 %v738, 0.0
    %v747 = vmax.f32 %v739, 0.0
    %v748 = vmax.f32 %v740, 0.0
    %v749 = vmax.f32 %v741, 0.0
    %v750 = vmax.f32 %v742, 0.0
    %v751 = vmax.f32 %v743, 0.0
    %v752 = vmul.f32 %v744, %v292
    %v753 = vmul.f32 %v745, %v292
    %v754 = vmul.f32 %v746, %v297
    %v755 = vmul.f32 %v747, %v297
    %v756 = vmul.f32 %v748, %v302
    %v757 = vmul.f32 %v749, %v302
    %v758 = vmul.f32 %v750, %v307
    %v759 = vmul.f32 %v751, %v307
    %v760 = vadd.f32 %v752, %v754
    %v761 = vadd.f32 %v760, %v756
    %v762 = vadd.f32 %v761, %v758
    %v763 = vrot.slane %v762, 4
    %v764 = vadd.f32 %v762, %v763
    %v765 = vrot.slane %v764, 2
    %v766 = vadd.f32 %v764, %v765
    %v767 = vrot.slane %v766, 1
    %v768 = vadd.f32 %v766, %v767
    %v769 = vadd.f32 %v753, %v755
    %v770 = vadd.f32 %v769, %v757
    %v771 = vadd.f32 %v770, %v759
    %v772 = vrot.slane %v771, 4
    %v773 = vadd.f32 %v771, %v772
    %v774 = vrot.slane %v773, 2
    %v775 = vadd.f32 %v773, %v774
    %v776 = vrot.slane %v775, 1
    %v777 = vadd.f32 %v775, %v776
    %vm778 = vcmask 1040384
    %v779 = vsel %vm778, %v362, %v420
    %v780 = vsel %vm778, %v371, %v429
    %vm781 = vcmask 1041408
    %v782 = vsel %vm781, %v779, %v478
    %v783 = vsel %vm781, %v780, %v487
    %vm784 = vcmask 1042432
    %v785 = vsel %vm784, %v782, %v536
    %v786 = vsel %vm784, %v783, %v545
    %vm787 = vcmask 1043456
    %v788 = vsel %vm787, %v785, %v594
    %v789 = vsel %vm787, %v786, %v603
    %vm790 = vcmask 1044480
    %v791 = vsel %vm790, %v788, %v652
    %v792 = vsel %vm790, %v789, %v661
    %vm793 = vcmask 1045504
    %v794 = vsel %vm793, %v791, %v710
    %v795 = vsel %vm793, %v792, %v719
    %vm796 = vcmask 1046528
    %v797 = vsel %vm796, %v794, %v768
    %v798 = vsel %vm796, %v795, %v777
    %v799 = vstv %s309
    %v800 = vadd.f32 %v797, %v799
    %v801 = vadd.f32 %v798, %v799
    %802 = vst [vmem:[#allocation6] sm:$0xff] %v800
    %803 = vst [vmem:[#allocation6 + $0x8] sm:$0xff] %v801
    // Predicated region
    $region34: #{tpu_custom_call.1} parent=1 // pred_check
      _
    $region35: #{tpu_custom_call.1} parent=1 // pred_check_branch
      %805 = sbr.rel (0) target = $region37
    $region36: #{tpu_custom_call.1} parent=1 // pred_region
      %s807 = ssub.s32 256, 256
      %808 = vsyncadd [#allocation5], %s807
      %s810 = sshll.u32 [#allocation6], 4
      %s811 = int_to_ptr.vmem [resolvable:$true] %s810
      %813 = dma.vmem_to_hbm [thread:$0]  %s811, 256, %s7, [#allocation5]
    $region37: #{tpu_custom_call.1} parent=1 // pred_fallthru
      _
    // Predicated region
    $region38: #{tpu_custom_call.1} parent=1 // pred_check
      _
    $region39: #{tpu_custom_call.1} parent=1 // pred_check_branch
      %815 = sbr.rel (0) target = $region41
    $region40: #{tpu_custom_call.1} parent=1 // pred_region
      %816 = dma.done [#allocation5], 256
    $region41: #{tpu_custom_call.1} parent=1 // pred_fallthru
      _
    %817 = vsyncpa [#allocation4], 1
    %818 = vsyncpa [#allocation5], 1

</llo_original>
